<compile_context>
chip_gen: v5e
topology: v5e:2x2
jax: 0.10.0
libtpu: 0.0.40
codegen_flags: <defaults>
</compile_context>

<pallas_src>
import functools

import jax
import jax.numpy as jnp
from jax import lax
from jax.experimental import pallas as pl
from jax.experimental.pallas import tpu as pltpu


def _matcher_kernel(s_ref, q_ref, w1_ref, w2_ref, mask_ref, col_ref,
                    so_ref, qo_ref):
    # s_ref/q_ref blocks: (R, Dp) with R = Bt * N batch items stacked on the
    # sublane axis, Dp = D padded to a multiple of 128 (lane-dense).
    s = s_ref[...]                                             # [R, Dp]
    q = q_ref[...]                                             # [R, Dp]
    R = s.shape[0]

    # --- support rows L2-normalized (rsqrt -> EUP slot), eps-guarded.
    #     Query-side normalization and the "1 - sim" subtract are dropped: a
    #     positive per-query-row scale / affine map does not change the argmax.
    inv_ns = lax.rsqrt(jnp.maximum(jnp.sum(s * s, axis=-1, keepdims=True),
                                   1e-12))                     # [R, 1]
    s_n = s * inv_ns

    # --- similarity: rows = query rows, cols = support rows (one big matmul).
    sim = lax.dot_general(q, s_n, (((1,), (1,)), ((), ())),
                          preferred_element_type=jnp.float32)  # [R, R]
    # Block-diagonal additive mask (0 on same batch item, -1e30 across items):
    # precomputed in the wrapper, fetched once (constant block index).
    sim = sim + mask_ref[...]

    # --- argmax over support columns (== argmin of cost), first index on ties.
    row_max = jnp.max(sim, axis=-1, keepdims=True)             # [R, 1]
    col_ids = col_ref[...]                                     # [R, R] int32
    cand = jnp.where(sim == row_max, col_ids, R)               # [R, R]
    sup_idx = jnp.min(cand, axis=-1, keepdims=True)            # [R, 1]

    # --- gather matched support rows via one-hot matmul (MXU, no dyn index).
    onehot = (col_ids == sup_idx).astype(jnp.float32)          # [R, R]
    s_matched = jnp.dot(onehot, s,
                        preferred_element_type=jnp.float32)    # [R, Dp]

    # --- learnable-matcher MLP + residual, written straight to the outputs
    #     (no concat / slice: avoids extra [R, Dp] VMEM copies).
    w1 = w1_ref[...]                                           # [Dp, Hp]
    w2 = w2_ref[...]                                           # [Hp, Dp]

    def mlp(x):
        h = jnp.maximum(jnp.dot(x, w1, preferred_element_type=jnp.float32), 0.0)
        return jnp.maximum(jnp.dot(h, w2, preferred_element_type=jnp.float32), 0.0)

    so_ref[...] = (s_matched + mlp(s_matched)).astype(so_ref.dtype)
    qo_ref[...] = (q + mlp(q)).astype(qo_ref.dtype)


def _round_up(x, m):
    return (x + m - 1) // m * m


def _tensorcores_per_chip():
    # TODO(synk): string-based detection; v7x exposes 2 TensorCores per chip.
    try:
        kind = jax.devices()[0].device_kind.lower()
        if "v7" in kind:
            return 2
    except Exception:
        pass
    return 1


def _pick_block_batch(B, N, *, max_rows=512, num_cores=1):
    """Largest divisor Bt of B with Bt*N <= max_rows.

    v5e/v6e (1 TC): the grid is a serial loop, so take the largest block
    (G=1 when it fits) to minimize per-step pipeline overhead.
    v7x (2 TC): prefer an even grid with R = Bt*N >= 128 per step so both
    cores are busy and the R x R elementwise chain is lane-dense.
    """
    divs = [d for d in range(1, B + 1)
            if B % d == 0 and d * N <= max_rows
            and (B // d == 1 or (d * N) % 8 == 0)]
    if not divs:
        return 1
    if num_cores >= 2:
        good = [d for d in divs
                if (B // d) % num_cores == 0 and d * N >= 128]
        if good:
            return max(good)
    return max(divs)


def nn_matcher(support, query, w1, w2, *, block_batch=None):
    """support/query: [B, N, D]; w1: [D, D//2]; w2: [D//2, D] (x @ W layout)."""
    B, N, D = support.shape
    H = w1.shape[1]

    # Lane-dense padding of the feature / hidden dims (exact: zero padding).
    Dp = max(_round_up(D, 128), 128)
    Hp = max(_round_up(H, 128), 128)

    bt = (block_batch if block_batch is not None
          else _pick_block_batch(B, N, num_cores=_tensorcores_per_chip()))
    assert B % bt == 0, "block_batch must divide B"
    G = B // bt
    R = bt * N
    # (8,128) rule: block second-minor dim must be /8 unless it spans the array.
    assert (R % 8 == 0) or (G == 1), "choose block_batch so Bt*N is a multiple of 8"

    f32 = jnp.float32
    s2 = jnp.pad(support.reshape(B * N, D), ((0, 0), (0, Dp - D)))
    q2 = jnp.pad(query.reshape(B * N, D), ((0, 0), (0, Dp - D)))
    w1p = jnp.pad(w1, ((0, Dp - D), (0, Hp - H)))
    w2p = jnp.pad(w2, ((0, Hp - H), (0, Dp - D)))

    # Block-diagonal "same batch item" additive mask + column-index plane,
    # identical for every grid step (index_map returns (0, 0)).
    item = jnp.arange(R, dtype=jnp.int32) // N
    same = item[:, None] == item[None, :]
    mask = jnp.where(same, 0.0, -1e30).astype(f32)                        # [R, R]
    col_ids = jnp.broadcast_to(jnp.arange(R, dtype=jnp.int32)[None, :],
                               (R, R))                                    # [R, R]

    out_shape = (
        jax.ShapeDtypeStruct((B * N, Dp), support.dtype),
        jax.ShapeDtypeStruct((B * N, Dp), query.dtype),
    )
    grid_spec = pltpu.PrefetchScalarGridSpec(
        num_scalar_prefetch=0,
        grid=(G,),
        in_specs=[
            pl.BlockSpec((R, Dp), lambda g: (g, 0)),     # support slab
            pl.BlockSpec((R, Dp), lambda g: (g, 0)),     # query slab
            pl.BlockSpec((Dp, Hp), lambda g: (0, 0)),    # W1 (padded)
            pl.BlockSpec((Hp, Dp), lambda g: (0, 0)),    # W2 (padded)
            pl.BlockSpec((R, R), lambda g: (0, 0)),      # additive block-diag mask
            pl.BlockSpec((R, R), lambda g: (0, 0)),      # column indices
        ],
        out_specs=[
            pl.BlockSpec((R, Dp), lambda g: (g, 0)),
            pl.BlockSpec((R, Dp), lambda g: (g, 0)),
        ],
    )

    # Advisory cost hint for XLA scheduling around the custom call.
    flops = G * (2 * R * R * Dp            # similarity matmul
                 + 2 * R * R * Dp          # one-hot gather matmul
                 + 2 * (2 * R * Dp * Hp + 2 * R * Hp * Dp))   # two MLPs
    cost = pl.CostEstimate(
        flops=flops,
        transcendentals=B * N,             # rsqrt per support row
        bytes_accessed=4 * (4 * B * N * Dp + 2 * Dp * Hp + 2 * R * R),
    )

    # Explicit scoped-VMEM limit: stays well under v7x's 64 MiB physical VMEM
    # (max_rows=512 keeps the ~6 live R x R f32 temporaries small everywhere).
    est = 4 * (8 * R * Dp + 10 * R * R + 4 * Dp * Hp)
    vmem_limit = int(min(max(2 * est, 32 << 20), 48 << 20))

    s_out, q_out = pl.pallas_call(
        _matcher_kernel,
        out_shape=out_shape,
        grid_spec=grid_spec,
        compiler_params=pltpu.CompilerParams(
            dimension_semantics=("parallel",),
            vmem_limit_bytes=vmem_limit),
        cost_estimate=cost,
    )(s2, q2, w1p, w2p, mask, col_ids)

    # Strip the lane padding and restore [B, N, D].
    return (s_out[:, :D].reshape(B, N, D),
            q_out[:, :D].reshape(B, N, D))


def nn_matcher_ref(support, query, w1, w2):
    """Pure-JAX reference mirroring the PyTorch module."""
    ns = jnp.linalg.norm(support, axis=-1, keepdims=True)
    nq = jnp.linalg.norm(query, axis=-1, keepdims=True)
    cost = support @ jnp.swapaxes(query, 1, 2)
    cost = 1.0 - cost / (ns * jnp.swapaxes(nq, 1, 2))
    cost_t = jnp.swapaxes(cost, -2, -1)                  # [B, Nq, Ns]
    sup_idx = jnp.argmin(cost_t, axis=-1)                # [B, Nq]
    s_m = jnp.take_along_axis(support, sup_idx[..., None], axis=1)
    q_m = query

    def mlp(x):
        return jnp.maximum(jnp.maximum(x @ w1, 0.0) @ w2, 0.0)

    return s_m + mlp(s_m), q_m + mlp(q_m)


if __name__ == "__main__":
    B, N, D = 8, 8, 32            # batch, num_supervectors, dim
    H = D // 2

    key = jax.random.PRNGKey(0)
    k_s, k_q, k_w1, k_w2 = jax.random.split(key, 4)
    support = jax.random.normal(k_s, (B, N, D), dtype=jnp.float32)
    query = jax.random.normal(k_q, (B, N, D), dtype=jnp.float32)
    # PyTorch nn.Linear stores [out, in]; weights kept pre-transposed to x @ W.
    w1 = jax.random.normal(k_w1, (D, H), dtype=jnp.float32) * 0.1
    w2 = jax.random.normal(k_w2, (H, D), dtype=jnp.float32) * 0.1

    s_out, q_out = nn_matcher(support, query, w1, w2)
    jax.block_until_ready((s_out, q_out))

    s_ref, q_ref = nn_matcher_ref(support, query, w1, w2)
    assert jnp.allclose(s_out, s_ref, rtol=1e-4, atol=1e-4)
    assert jnp.allclose(q_out, q_ref, rtol=1e-4, atol=1e-4)

    print("KERNEL_OK")
</pallas_src>

<mosaic_0001>
module attributes {stable_mosaic.version = 11 : i64} {
  func.func @_matcher_kernel(%arg0: i32, %arg1: memref<64x128xf32, #tpu.memory_space<vmem>>, %arg2: memref<64x128xf32, #tpu.memory_space<vmem>>, %arg3: memref<128x128xf32, #tpu.memory_space<vmem>>, %arg4: memref<128x128xf32, #tpu.memory_space<vmem>>, %arg5: memref<64x64xf32, #tpu.memory_space<vmem>>, %arg6: memref<64x64xi32, #tpu.memory_space<vmem>>, %arg7: memref<64x128xf32, #tpu.memory_space<vmem>>, %arg8: memref<64x128xf32, #tpu.memory_space<vmem>>) attributes {dimension_semantics = [#tpu.dimension_semantics<parallel>], iteration_bounds = array<i64: 1>, scalar_prefetch = 0 : i64, scratch_operands = 0 : i64, tpu.core_type = #tpu.core_type<tc>, window_params = [{transform_indices = @transform_0, window_bounds = array<i64: 64, 128>}, {transform_indices = @transform_1, window_bounds = array<i64: 64, 128>}, {pipeline_mode = #tpu.pipeline_mode<synchronous>, transform_indices = @transform_2, window_bounds = array<i64: 128, 128>}, {pipeline_mode = #tpu.pipeline_mode<synchronous>, transform_indices = @transform_3, window_bounds = array<i64: 128, 128>}, {pipeline_mode = #tpu.pipeline_mode<synchronous>, transform_indices = @transform_4, window_bounds = array<i64: 64, 64>}, {pipeline_mode = #tpu.pipeline_mode<synchronous>, transform_indices = @transform_5, window_bounds = array<i64: 64, 64>}, {transform_indices = @transform_6, window_bounds = array<i64: 64, 128>}, {transform_indices = @transform_7, window_bounds = array<i64: 64, 128>}]} {
    %c0 = arith.constant 0 : index
    %c0_0 = arith.constant 0 : index
    %0 = vector.load %arg1[%c0, %c0_0] : memref<64x128xf32, #tpu.memory_space<vmem>>, vector<64x128xf32>
    %c0_1 = arith.constant 0 : index
    %c0_2 = arith.constant 0 : index
    %1 = vector.load %arg2[%c0_1, %c0_2] : memref<64x128xf32, #tpu.memory_space<vmem>>, vector<64x128xf32>
    %2 = arith.mulf %0, %0 : vector<64x128xf32>
    %cst = arith.constant dense<0.000000e+00> : vector<64xf32>
    %3 = vector.multi_reduction <add>, %2, %cst [1] : vector<64x128xf32> to vector<64xf32>
    %4 = vector.shape_cast %3 : vector<64xf32> to vector<64x1xf32>
    %cst_3 = arith.constant 9.99999996E-13 : f32
    %5 = vector.broadcast %cst_3 : f32 to vector<64x1xf32>
    %6 = arith.maximumf %4, %5 : vector<64x1xf32>
    %7 = math.rsqrt %6 : vector<64x1xf32>
    %8 = vector.broadcast %7 : vector<64x1xf32> to vector<64x128xf32>
    %9 = arith.mulf %0, %8 : vector<64x128xf32>
    %cst_4 = arith.constant dense<0.000000e+00> : vector<64x64xf32>
    %10 = tpu.matmul %1, %9, %cst_4 {dimension_numbers = #tpu.dot_dimension_numbers<[1], [1], [0], [0], [0, 0, 1, 0], [], []>} : vector<64x128xf32>, vector<64x128xf32>, vector<64x64xf32> -> vector<64x64xf32>
    %c0_5 = arith.constant 0 : index
    %c0_6 = arith.constant 0 : index
    %11 = vector.load %arg5[%c0_5, %c0_6] : memref<64x64xf32, #tpu.memory_space<vmem>>, vector<64x64xf32>
    %12 = arith.addf %10, %11 : vector<64x64xf32>
    %cst_7 = arith.constant dense<0xFF800000> : vector<64xf32>
    %13 = vector.multi_reduction <maximumf>, %12, %cst_7 [1] : vector<64x64xf32> to vector<64xf32>
    %14 = vector.shape_cast %13 : vector<64xf32> to vector<64x1xf32>
    %c0_8 = arith.constant 0 : index
    %c0_9 = arith.constant 0 : index
    %15 = vector.load %arg6[%c0_8, %c0_9] : memref<64x64xi32, #tpu.memory_space<vmem>>, vector<64x64xi32>
    %16 = vector.broadcast %14 : vector<64x1xf32> to vector<64x64xf32>
    %17 = arith.cmpf oeq, %12, %16 : vector<64x64xf32>
    %c64_i32 = arith.constant 64 : i32
    %18 = vector.broadcast %c64_i32 : i32 to vector<64x64xi32>
    %19 = arith.select %17, %15, %18 : vector<64x64xi1>, vector<64x64xi32>
    %cst_10 = arith.constant dense<2147483647> : vector<64xi32>
    %20 = vector.multi_reduction <minsi>, %19, %cst_10 [1] : vector<64x64xi32> to vector<64xi32>
    %21 = vector.shape_cast %20 : vector<64xi32> to vector<64x1xi32>
    %22 = vector.broadcast %21 : vector<64x1xi32> to vector<64x64xi32>
    %23 = arith.cmpi eq, %15, %22 : vector<64x64xi32>
    %24 = arith.extui %23 : vector<64x64xi1> to vector<64x64xi32>
    %25 = arith.sitofp %24 : vector<64x64xi32> to vector<64x64xf32>
    %cst_11 = arith.constant dense<0.000000e+00> : vector<64x128xf32>
    %26 = tpu.matmul %25, %0, %cst_11 {dimension_numbers = #tpu.dot_dimension_numbers<[1], [0], [0], [1], [0, 0, 1, 1], [], []>} : vector<64x64xf32>, vector<64x128xf32>, vector<64x128xf32> -> vector<64x128xf32>
    %c0_12 = arith.constant 0 : index
    %c0_13 = arith.constant 0 : index
    %27 = vector.load %arg3[%c0_12, %c0_13] : memref<128x128xf32, #tpu.memory_space<vmem>>, vector<128x128xf32>
    %c0_14 = arith.constant 0 : index
    %c0_15 = arith.constant 0 : index
    %28 = vector.load %arg4[%c0_14, %c0_15] : memref<128x128xf32, #tpu.memory_space<vmem>>, vector<128x128xf32>
    %cst_16 = arith.constant dense<0.000000e+00> : vector<64x128xf32>
    %29 = tpu.matmul %26, %27, %cst_16 {dimension_numbers = #tpu.dot_dimension_numbers<[1], [0], [0], [1], [0, 0, 1, 1], [], []>} : vector<64x128xf32>, vector<128x128xf32>, vector<64x128xf32> -> vector<64x128xf32>
    %cst_17 = arith.constant 0.000000e+00 : f32
    %30 = vector.broadcast %cst_17 : f32 to vector<64x128xf32>
    %31 = arith.maximumf %29, %30 : vector<64x128xf32>
    %cst_18 = arith.constant dense<0.000000e+00> : vector<64x128xf32>
    %32 = tpu.matmul %31, %28, %cst_18 {dimension_numbers = #tpu.dot_dimension_numbers<[1], [0], [0], [1], [0, 0, 1, 1], [], []>} : vector<64x128xf32>, vector<128x128xf32>, vector<64x128xf32> -> vector<64x128xf32>
    %cst_19 = arith.constant 0.000000e+00 : f32
    %33 = vector.broadcast %cst_19 : f32 to vector<64x128xf32>
    %34 = arith.maximumf %32, %33 : vector<64x128xf32>
    %35 = arith.addf %26, %34 : vector<64x128xf32>
    %c0_20 = arith.constant 0 : index
    %c0_21 = arith.constant 0 : index
    %36 = vector.load %arg7[%c0_20, %c0_21] : memref<64x128xf32, #tpu.memory_space<vmem>>, vector<64x128xf32>
    tpu.vector_store %arg7[%c0_20, %c0_21], %35 {strides = array<i32>} : memref<64x128xf32, #tpu.memory_space<vmem>>, vector<64x128xf32>,
    %cst_22 = arith.constant dense<0.000000e+00> : vector<64x128xf32>
    %37 = tpu.matmul %1, %27, %cst_22 {dimension_numbers = #tpu.dot_dimension_numbers<[1], [0], [0], [1], [0, 0, 1, 1], [], []>} : vector<64x128xf32>, vector<128x128xf32>, vector<64x128xf32> -> vector<64x128xf32>
    %cst_23 = arith.constant 0.000000e+00 : f32
    %38 = vector.broadcast %cst_23 : f32 to vector<64x128xf32>
    %39 = arith.maximumf %37, %38 : vector<64x128xf32>
    %cst_24 = arith.constant dense<0.000000e+00> : vector<64x128xf32>
    %40 = tpu.matmul %39, %28, %cst_24 {dimension_numbers = #tpu.dot_dimension_numbers<[1], [0], [0], [1], [0, 0, 1, 1], [], []>} : vector<64x128xf32>, vector<128x128xf32>, vector<64x128xf32> -> vector<64x128xf32>
    %cst_25 = arith.constant 0.000000e+00 : f32
    %41 = vector.broadcast %cst_25 : f32 to vector<64x128xf32>
    %42 = arith.maximumf %40, %41 : vector<64x128xf32>
    %43 = arith.addf %1, %42 : vector<64x128xf32>
    %c0_26 = arith.constant 0 : index
    %c0_27 = arith.constant 0 : index
    %44 = vector.load %arg8[%c0_26, %c0_27] : memref<64x128xf32, #tpu.memory_space<vmem>>, vector<64x128xf32>
    tpu.vector_store %arg8[%c0_26, %c0_27], %43 {strides = array<i32>} : memref<64x128xf32, #tpu.memory_space<vmem>>, vector<64x128xf32>,
    return
  }
  func.func @transform_0(%arg0: i32) -> (i32, i32) {
    %c0_i32 = arith.constant 0 : i32
    %c0_i32_0 = arith.constant 0 : i32
    return %arg0, %c0_i32 : i32, i32
  }
  func.func @transform_1(%arg0: i32) -> (i32, i32) {
    %c0_i32 = arith.constant 0 : i32
    %c0_i32_0 = arith.constant 0 : i32
    return %arg0, %c0_i32 : i32, i32
  }
  func.func @transform_2(%arg0: i32) -> (i32, i32) {
    %c0_i32 = arith.constant 0 : i32
    %c0_i32_0 = arith.constant 0 : i32
    %c0_i32_1 = arith.constant 0 : i32
    return %c0_i32, %c0_i32_0 : i32, i32
  }
  func.func @transform_3(%arg0: i32) -> (i32, i32) {
    %c0_i32 = arith.constant 0 : i32
    %c0_i32_0 = arith.constant 0 : i32
    %c0_i32_1 = arith.constant 0 : i32
    return %c0_i32, %c0_i32_0 : i32, i32
  }
  func.func @transform_4(%arg0: i32) -> (i32, i32) {
    %c0_i32 = arith.constant 0 : i32
    %c0_i32_0 = arith.constant 0 : i32
    %c0_i32_1 = arith.constant 0 : i32
    return %c0_i32, %c0_i32_0 : i32, i32
  }
  func.func @transform_5(%arg0: i32) -> (i32, i32) {
    %c0_i32 = arith.constant 0 : i32
    %c0_i32_0 = arith.constant 0 : i32
    %c0_i32_1 = arith.constant 0 : i32
    return %c0_i32, %c0_i32_0 : i32, i32
  }
  func.func @transform_6(%arg0: i32) -> (i32, i32) {
    %c0_i32 = arith.constant 0 : i32
    %c0_i32_0 = arith.constant 0 : i32
    return %arg0, %c0_i32 : i32, i32
  }
  func.func @transform_7(%arg0: i32) -> (i32, i32) {
    %c0_i32 = arith.constant 0 : i32
    %c0_i32_0 = arith.constant 0 : i32
    return %arg0, %c0_i32 : i32, i32
  }
}

</mosaic_0001>

<llo_original>
// kernel: tpu_custom_call.1
$region0: #{tpu_custom_call.1}
  #allocation0 [shape = 'u32[]', space=smem, size = 0x4, offset = 0x4, fixed_abs, tag = 'smem constant byte address 0x4 - core index']
  #allocation1 [shape = 'u32[72,128]{1,0:T(1,128)}', space=vmem, size = 0x9000, scoped, tag = 'internal scratch']
  %s0 = inlined_call_operand.hbm [shape: f32[64,128], index: 0, kind: input, shape index: {}]
  %s1 = inlined_call_operand.hbm [shape: f32[64,128], index: 1, kind: input, shape index: {}]
  %s2 = inlined_call_operand.hbm [shape: f32[128,128], index: 2, kind: input, shape index: {}]
  %s3 = inlined_call_operand.hbm [shape: f32[128,128], index: 3, kind: input, shape index: {}]
  %s4 = inlined_call_operand.hbm [shape: f32[64,64], index: 4, kind: input, shape index: {}]
  %s5 = inlined_call_operand.hbm [shape: s32[64,64], index: 5, kind: input, shape index: {}]
  %s6 = inlined_call_operand.hbm [shape: f32[64,128], index: 6, kind: output, shape index: {0}]
  %s7 = inlined_call_operand.hbm [shape: f32[64,128], index: 7, kind: output, shape index: {1}]
  %8 = xla_tuple %s6, %s7
  %s9 = sld [smem:[#allocation0]]
  $region66: #{tpu_custom_call.1} parent=0
    _
  %s11 = ssub.s32 1, %s9
  %s12 = scalar_select 0, %s11, %s9
  $region1: #{tpu_custom_call.1} parent=0
    #allocation2 [shape = 'u8[32768]{0}', space=vmem, size = 0x8000, scoped, tag = 'input window, operand 0, single buffered']
    #allocation3 [shape = 's32[1]{0}', space=sflag, size = 0x4, scoped, tag = 'scoped memory for tpu_custom_call.1']
    #allocation4 [shape = 's32[1]{0}', space=sflag, size = 0x4, scoped, tag = 'scoped memory for tpu_custom_call.1']
    #allocation5 [shape = 'u8[32768]{0}', space=vmem, size = 0x8000, scoped, tag = 'input window, operand 1, single buffered']
    #allocation6 [shape = 's32[1]{0}', space=sflag, size = 0x4, scoped, tag = 'scoped memory for tpu_custom_call.1']
    #allocation7 [shape = 'u8[65536]{0}', space=vmem, size = 0x10000, scoped, tag = 'input window, operand 2, single buffered']
    #allocation8 [shape = 'u8[65536]{0}', space=vmem, size = 0x10000, scoped, tag = 'input window, operand 3, single buffered']
    #allocation9 [shape = 's32[1]{0}', space=sflag, size = 0x4, scoped, tag = 'scoped memory for tpu_custom_call.1']
    #allocation10 [shape = 'u8[32768]{0}', space=vmem, size = 0x8000, scoped, tag = 'input window, operand 4, single buffered']
    #allocation11 [shape = 'u8[32768]{0}', space=vmem, size = 0x8000, scoped, tag = 'input window, operand 5, single buffered']
    #allocation12 [shape = 's32[1]{0}', space=sflag, size = 0x4, scoped, tag = 'scoped memory for tpu_custom_call.1']
    #allocation13 [shape = 'u8[32768]{0}', space=vmem, size = 0x8000, scoped, tag = 'output window, operand 0, single buffered']
    #allocation14 [shape = 'u8[32768]{0}', space=vmem, size = 0x8000, scoped, tag = 'output window, operand 1, single buffered']
    #allocation15 [shape = 's32[1]{0}', space=sflag, size = 0x4, scoped, tag = 'scoped memory for tpu_custom_call.1']
    %13 = vsyncpa [#allocation3], 0
    %14 = vsyncpa [#allocation6], 0
    %15 = vsyncpa [#allocation9], 0
    %16 = vsyncpa [#allocation12], 0
    %17 = vsyncpa [#allocation4], 0
    %18 = vsyncpa [#allocation15], 0
    // Predicated region
    $region2: #{tpu_custom_call.1} parent=1 // pred_check
      _
    $region3: #{tpu_custom_call.1} parent=1 // pred_check_branch
      %20 = sbr.rel (0) target = $region5
    $region4: #{tpu_custom_call.1} parent=1 // pred_region
      %22 = vsyncadd [#allocation3], 0
      %s23 = sshll.u32 %s0, 4
      %s24 = int_to_ptr.hbm [resolvable:$true] %s23
      %s25 = sshll.u32 [#allocation2], 4
      %s26 = int_to_ptr.vmem [resolvable:$true] %s25
      %31 = dma.hbm_to_vmem [thread:$0]  %s24, 1024, %s26, [#allocation3], 128, 128, 8
    $region5: #{tpu_custom_call.1} parent=1 // pred_fallthru
      _
    // Predicated region
    $region6: #{tpu_custom_call.1} parent=1 // pred_check
      _
    $region7: #{tpu_custom_call.1} parent=1 // pred_check_branch
      %33 = sbr.rel (0) target = $region9
    $region8: #{tpu_custom_call.1} parent=1 // pred_region
      %35 = vsyncadd [#allocation6], 0
      %s36 = sshll.u32 %s1, 4
      %s37 = int_to_ptr.hbm [resolvable:$true] %s36
      %s38 = sshll.u32 [#allocation5], 4
      %s39 = int_to_ptr.vmem [resolvable:$true] %s38
      %44 = dma.hbm_to_vmem [thread:$0]  %s37, 1024, %s39, [#allocation6], 128, 128, 8
    $region9: #{tpu_custom_call.1} parent=1 // pred_fallthru
      _
    // Predicated region
    $region10: #{tpu_custom_call.1} parent=1 // pred_check
      _
    $region11: #{tpu_custom_call.1} parent=1 // pred_check_branch
      %46 = sbr.rel (0) target = $region13
    $region12: #{tpu_custom_call.1} parent=1 // pred_region
      %48 = vsyncadd [#allocation6], 0
      %s49 = sshll.u32 %s2, 4
      %s50 = int_to_ptr.hbm [resolvable:$true] %s49
      %s51 = sshll.u32 [#allocation7], 4
      %s52 = int_to_ptr.vmem [resolvable:$true] %s51
      %57 = dma.hbm_to_vmem [thread:$0]  %s50, 2048, %s52, [#allocation6], 128, 128, 8
    $region13: #{tpu_custom_call.1} parent=1 // pred_fallthru
      _
    // Predicated region
    $region14: #{tpu_custom_call.1} parent=1 // pred_check
      _
    $region15: #{tpu_custom_call.1} parent=1 // pred_check_branch
      %59 = sbr.rel (0) target = $region17
    $region16: #{tpu_custom_call.1} parent=1 // pred_region
      %61 = vsyncadd [#allocation9], 0
      %s62 = sshll.u32 %s3, 4
      %s63 = int_to_ptr.hbm [resolvable:$true] %s62
      %s64 = sshll.u32 [#allocation8], 4
      %s65 = int_to_ptr.vmem [resolvable:$true] %s64
      %70 = dma.hbm_to_vmem [thread:$0]  %s63, 2048, %s65, [#allocation9], 128, 128, 8
    $region17: #{tpu_custom_call.1} parent=1 // pred_fallthru
      _
    // Predicated region
    $region18: #{tpu_custom_call.1} parent=1 // pred_check
      _
    $region19: #{tpu_custom_call.1} parent=1 // pred_check_branch
      %72 = sbr.rel (0) target = $region21
    $region20: #{tpu_custom_call.1} parent=1 // pred_region
      %74 = vsyncadd [#allocation9], 0
      %s75 = sshll.u32 %s4, 4
      %s76 = int_to_ptr.hbm [resolvable:$true] %s75
      %s77 = sshll.u32 [#allocation10], 4
      %s78 = int_to_ptr.vmem [resolvable:$true] %s77
      %83 = dma.hbm_to_vmem [thread:$0]  %s76, 1024, %s78, [#allocation9], 128, 128, 8
    $region21: #{tpu_custom_call.1} parent=1 // pred_fallthru
      _
    // Predicated region
    $region22: #{tpu_custom_call.1} parent=1 // pred_check
      _
    $region23: #{tpu_custom_call.1} parent=1 // pred_check_branch
      %85 = sbr.rel (0) target = $region25
    $region24: #{tpu_custom_call.1} parent=1 // pred_region
      %87 = vsyncadd [#allocation12], 0
      %s88 = sshll.u32 %s5, 4
      %s89 = int_to_ptr.hbm [resolvable:$true] %s88
      %s90 = sshll.u32 [#allocation11], 4
      %s91 = int_to_ptr.vmem [resolvable:$true] %s90
      %96 = dma.hbm_to_vmem [thread:$0]  %s89, 1024, %s91, [#allocation12], 128, 128, 8
    $region25: #{tpu_custom_call.1} parent=1 // pred_fallthru
      _
    // Predicated region
    $region26: #{tpu_custom_call.1} parent=1 // pred_check
      _
    $region27: #{tpu_custom_call.1} parent=1 // pred_check_branch
      %98 = sbr.rel (0) target = $region29
    $region28: #{tpu_custom_call.1} parent=1 // pred_region
      %100 = dma.done [#allocation3], 1024
    $region29: #{tpu_custom_call.1} parent=1 // pred_fallthru
      _
    // Predicated region
    $region30: #{tpu_custom_call.1} parent=1 // pred_check
      _
    $region31: #{tpu_custom_call.1} parent=1 // pred_check_branch
      %102 = sbr.rel (0) target = $region33
    $region32: #{tpu_custom_call.1} parent=1 // pred_region
      %104 = dma.done [#allocation6], 1024
    $region33: #{tpu_custom_call.1} parent=1 // pred_fallthru
      _
    // Predicated region
    $region34: #{tpu_custom_call.1} parent=1 // pred_check
      _
    $region35: #{tpu_custom_call.1} parent=1 // pred_check_branch
      %106 = sbr.rel (0) target = $region37
    $region36: #{tpu_custom_call.1} parent=1 // pred_region
      %108 = dma.done [#allocation6], 2048
    $region37: #{tpu_custom_call.1} parent=1 // pred_fallthru
      _
    // Predicated region
    $region38: #{tpu_custom_call.1} parent=1 // pred_check
      _
    $region39: #{tpu_custom_call.1} parent=1 // pred_check_branch
      %110 = sbr.rel (0) target = $region41
    $region40: #{tpu_custom_call.1} parent=1 // pred_region
      %112 = dma.done [#allocation9], 2048
    $region41: #{tpu_custom_call.1} parent=1 // pred_fallthru
      _
    // Predicated region
    $region42: #{tpu_custom_call.1} parent=1 // pred_check
      _
    $region43: #{tpu_custom_call.1} parent=1 // pred_check_branch
      %114 = sbr.rel (0) target = $region45
    $region44: #{tpu_custom_call.1} parent=1 // pred_region
      %116 = dma.done [#allocation9], 1024
    $region45: #{tpu_custom_call.1} parent=1 // pred_fallthru
      _
    // Predicated region
    $region46: #{tpu_custom_call.1} parent=1 // pred_check
      _
    $region47: #{tpu_custom_call.1} parent=1 // pred_check_branch
      %118 = sbr.rel (0) target = $region49
    $region48: #{tpu_custom_call.1} parent=1 // pred_region
      %120 = dma.done [#allocation12], 1024
    $region49: #{tpu_custom_call.1} parent=1 // pred_fallthru
      _
    %v121 = vld [vmem:[#allocation2] sm:$0xff]
    %v122 = vld [vmem:[#allocation2 + $0x8] sm:$0xff]
    %v123 = vld [vmem:[#allocation2 + $0x10] sm:$0xff]
    %v124 = vld [vmem:[#allocation2 + $0x18] sm:$0xff]
    %v125 = vld [vmem:[#allocation2 + $0x20] sm:$0xff]
    %v126 = vld [vmem:[#allocation2 + $0x28] sm:$0xff]
    %v127 = vld [vmem:[#allocation2 + $0x30] sm:$0xff]
    %v128 = vld [vmem:[#allocation2 + $0x38] sm:$0xff]
    %v129 = vld [vmem:[#allocation5] sm:$0xff]
    %v130 = vld [vmem:[#allocation5 + $0x8] sm:$0xff]
    %v131 = vld [vmem:[#allocation5 + $0x10] sm:$0xff]
    %v132 = vld [vmem:[#allocation5 + $0x18] sm:$0xff]
    %v133 = vld [vmem:[#allocation5 + $0x20] sm:$0xff]
    %v134 = vld [vmem:[#allocation5 + $0x28] sm:$0xff]
    %v135 = vld [vmem:[#allocation5 + $0x30] sm:$0xff]
    %v136 = vld [vmem:[#allocation5 + $0x38] sm:$0xff]
    %v137 = vmul.f32 %v121, %v121
    %v138 = vmul.f32 %v122, %v122
    %v139 = vmul.f32 %v123, %v123
    %v140 = vmul.f32 %v124, %v124
    %v141 = vmul.f32 %v125, %v125
    %v142 = vmul.f32 %v126, %v126
    %v143 = vmul.f32 %v127, %v127
    %v144 = vmul.f32 %v128, %v128
    %145 = vadd.xlane.f32.xlu0 %v137
    %v146 = vpop.xlane.xlu0 %145
    %147 = vadd.xlane.f32.xlu0 %v138
    %v148 = vpop.xlane.xlu0 %147
    %149 = vadd.xlane.f32.xlu0 %v139
    %v150 = vpop.xlane.xlu0 %149
    %151 = vadd.xlane.f32.xlu0 %v140
    %v152 = vpop.xlane.xlu0 %151
    %153 = vadd.xlane.f32.xlu0 %v141
    %v154 = vpop.xlane.xlu0 %153
    %155 = vadd.xlane.f32.xlu0 %v142
    %v156 = vpop.xlane.xlu0 %155
    %157 = vadd.xlane.f32.xlu0 %v143
    %v158 = vpop.xlane.xlu0 %157
    %159 = vadd.xlane.f32.xlu0 %v144
    %v160 = vpop.xlane.xlu0 %159
    %v161 = vmax.f32 %v146, 1e-12
    %v162 = vmax.f32 %v148, 1e-12
    %v163 = vmax.f32 %v150, 1e-12
    %v164 = vmax.f32 %v152, 1e-12
    %v165 = vmax.f32 %v154, 1e-12
    %v166 = vmax.f32 %v156, 1e-12
    %v167 = vmax.f32 %v158, 1e-12
    %v168 = vmax.f32 %v160, 1e-12
    %v169 = vrsqrt.pop %v161
    %v170 = vmul.f32 %v169, %v161
    %v171 = vmul.f32 %v170, %v169
    %v172 = vmul.f32 0.5, %v171
    %v173 = vsub.f32 1.5, %v172
    %v174 = vmul.f32 %v169, %v173
    %vm175 = vweird.f32 %v161
    %vm176 = vweird.f32 %v169
    %vm177 = vmor %vm175, %vm176
    %v178 = vsel %vm177, %v169, %v174
    %v179 = vrsqrt.pop %v162
    %v180 = vmul.f32 %v179, %v162
    %v181 = vmul.f32 %v180, %v179
    %v182 = vmul.f32 0.5, %v181
    %v183 = vsub.f32 1.5, %v182
    %v184 = vmul.f32 %v179, %v183
    %vm185 = vweird.f32 %v162
    %vm186 = vweird.f32 %v179
    %vm187 = vmor %vm185, %vm186
    %v188 = vsel %vm187, %v179, %v184
    %v189 = vrsqrt.pop %v163
    %v190 = vmul.f32 %v189, %v163
    %v191 = vmul.f32 %v190, %v189
    %v192 = vmul.f32 0.5, %v191
    %v193 = vsub.f32 1.5, %v192
    %v194 = vmul.f32 %v189, %v193
    %vm195 = vweird.f32 %v163
    %vm196 = vweird.f32 %v189
    %vm197 = vmor %vm195, %vm196
    %v198 = vsel %vm197, %v189, %v194
    %v199 = vrsqrt.pop %v164
    %v200 = vmul.f32 %v199, %v164
    %v201 = vmul.f32 %v200, %v199
    %v202 = vmul.f32 0.5, %v201
    %v203 = vsub.f32 1.5, %v202
    %v204 = vmul.f32 %v199, %v203
    %vm205 = vweird.f32 %v164
    %vm206 = vweird.f32 %v199
    %vm207 = vmor %vm205, %vm206
    %v208 = vsel %vm207, %v199, %v204
    %v209 = vrsqrt.pop %v165
    %v210 = vmul.f32 %v209, %v165
    %v211 = vmul.f32 %v210, %v209
    %v212 = vmul.f32 0.5, %v211
    %v213 = vsub.f32 1.5, %v212
    %v214 = vmul.f32 %v209, %v213
    %vm215 = vweird.f32 %v165
    %vm216 = vweird.f32 %v209
    %vm217 = vmor %vm215, %vm216
    %v218 = vsel %vm217, %v209, %v214
    %v219 = vrsqrt.pop %v166
    %v220 = vmul.f32 %v219, %v166
    %v221 = vmul.f32 %v220, %v219
    %v222 = vmul.f32 0.5, %v221
    %v223 = vsub.f32 1.5, %v222
    %v224 = vmul.f32 %v219, %v223
    %vm225 = vweird.f32 %v166
    %vm226 = vweird.f32 %v219
    %vm227 = vmor %vm225, %vm226
    %v228 = vsel %vm227, %v219, %v224
    %v229 = vrsqrt.pop %v167
    %v230 = vmul.f32 %v229, %v167
    %v231 = vmul.f32 %v230, %v229
    %v232 = vmul.f32 0.5, %v231
    %v233 = vsub.f32 1.5, %v232
    %v234 = vmul.f32 %v229, %v233
    %vm235 = vweird.f32 %v167
    %vm236 = vweird.f32 %v229
    %vm237 = vmor %vm235, %vm236
    %v238 = vsel %vm237, %v229, %v234
    %v239 = vrsqrt.pop %v168
    %v240 = vmul.f32 %v239, %v168
    %v241 = vmul.f32 %v240, %v239
    %v242 = vmul.f32 0.5, %v241
    %v243 = vsub.f32 1.5, %v242
    %v244 = vmul.f32 %v239, %v243
    %vm245 = vweird.f32 %v168
    %vm246 = vweird.f32 %v239
    %vm247 = vmor %vm245, %vm246
    %v248 = vsel %vm247, %v239, %v244
    %v249 = vmul.f32 %v121, %v178
    %v250 = vmul.f32 %v122, %v188
    %v251 = vmul.f32 %v123, %v198
    %v252 = vmul.f32 %v124, %v208
    %v253 = vmul.f32 %v125, %v218
    %v254 = vmul.f32 %v126, %v228
    %v255 = vmul.f32 %v127, %v238
    %v256 = vmul.f32 %v128, %v248
    %v257 = vld [vmem:[#allocation10] sm:$0xff]
    %v258 = vld [vmem:[#allocation10 + $0x8] sm:$0xff]
    %v259 = vld [vmem:[#allocation10 + $0x10] sm:$0xff]
    %v260 = vld [vmem:[#allocation10 + $0x18] sm:$0xff]
    %v261 = vld [vmem:[#allocation10 + $0x20] sm:$0xff]
    %v262 = vld [vmem:[#allocation10 + $0x28] sm:$0xff]
    %v263 = vld [vmem:[#allocation10 + $0x30] sm:$0xff]
    %v264 = vld [vmem:[#allocation10 + $0x38] sm:$0xff]
    %265 = vmatpush.xpose.msra.mxu0 0.0
    %266 = vmatpush.xpose.msra.mxu0 0.0
    %267 = vmatpush.xpose.msra.mxu0 0.0
    %268 = vmatpush.xpose.msra.mxu0 0.0
    %269 = vmatpush.xpose.msra.mxu0 0.0
    %270 = vmatpush.xpose.msra.mxu0 0.0
    %271 = vmatpush.xpose.msra.mxu0 0.0
    %272 = vmatpush.xpose.msra.mxu0 0.0
    %273 = vmatpush.xpose.msra.mxu0 %v256
    %274 = vmatpush.xpose.msra.mxu0 %v255
    %275 = vmatpush.xpose.msra.mxu0 %v254
    %276 = vmatpush.xpose.msra.mxu0 %v253
    %277 = vmatpush.xpose.msra.mxu0 %v252
    %278 = vmatpush.xpose.msra.mxu0 %v251
    %279 = vmatpush.xpose.msra.mxu0 %v250
    %280 = vmatpush.xpose.msra.mxu0 %v249
    %281 = vmatmul.f32.gmra.mxu0 %v129
    %v282 = vpop.f32.mrf.mxu0
    %v283 = vadd.f32 %v257, %v282
    %284 = vmatmul.f32.gmra.mxu0 %v130
    %v285 = vpop.f32.mrf.mxu0
    %v286 = vadd.f32 %v258, %v285
    %287 = vmatmul.f32.gmra.mxu0 %v131
    %v288 = vpop.f32.mrf.mxu0
    %v289 = vadd.f32 %v259, %v288
    %290 = vmatmul.f32.gmra.mxu0 %v132
    %v291 = vpop.f32.mrf.mxu0
    %v292 = vadd.f32 %v260, %v291
    %293 = vmatmul.f32.gmra.mxu0 %v133
    %v294 = vpop.f32.mrf.mxu0
    %v295 = vadd.f32 %v261, %v294
    %296 = vmatmul.f32.gmra.mxu0 %v134
    %v297 = vpop.f32.mrf.mxu0
    %v298 = vadd.f32 %v262, %v297
    %299 = vmatmul.f32.gmra.mxu0 %v135
    %v300 = vpop.f32.mrf.mxu0
    %v301 = vadd.f32 %v263, %v300
    %302 = vmatmul.f32.gmra.mxu0 %v136
    %v303 = vpop.f32.mrf.mxu0
    %v304 = vadd.f32 %v264, %v303
    %305 = vdwg.mxu0
    %vm306 = vcmask 523264
    %v307 = vsel %vm306, %v283, -inf
    %308 = vmax.xlane.f32.xlu0 %v307
    %v309 = vpop.xlane.xlu0 %308
    %v310 = vsel %vm306, %v286, -inf
    %311 = vmax.xlane.f32.xlu0 %v310
    %v312 = vpop.xlane.xlu0 %311
    %v313 = vsel %vm306, %v289, -inf
    %314 = vmax.xlane.f32.xlu0 %v313
    %v315 = vpop.xlane.xlu0 %314
    %v316 = vsel %vm306, %v292, -inf
    %317 = vmax.xlane.f32.xlu0 %v316
    %v318 = vpop.xlane.xlu0 %317
    %v319 = vsel %vm306, %v295, -inf
    %320 = vmax.xlane.f32.xlu0 %v319
    %v321 = vpop.xlane.xlu0 %320
    %v322 = vsel %vm306, %v298, -inf
    %323 = vmax.xlane.f32.xlu0 %v322
    %v324 = vpop.xlane.xlu0 %323
    %v325 = vsel %vm306, %v301, -inf
    %326 = vmax.xlane.f32.xlu0 %v325
    %v327 = vpop.xlane.xlu0 %326
    %v328 = vsel %vm306, %v304, -inf
    %329 = vmax.xlane.f32.xlu0 %v328
    %v330 = vpop.xlane.xlu0 %329
    %v331 = vld [vmem:[#allocation11] sm:$0xff]
    %v332 = vld [vmem:[#allocation11 + $0x8] sm:$0xff]
    %v333 = vld [vmem:[#allocation11 + $0x10] sm:$0xff]
    %v334 = vld [vmem:[#allocation11 + $0x18] sm:$0xff]
    %v335 = vld [vmem:[#allocation11 + $0x20] sm:$0xff]
    %v336 = vld [vmem:[#allocation11 + $0x28] sm:$0xff]
    %v337 = vld [vmem:[#allocation11 + $0x30] sm:$0xff]
    %v338 = vld [vmem:[#allocation11 + $0x38] sm:$0xff]
    %vm339 = vcmp.eq.f32.partialorder %v283, %v309
    %vm340 = vcmp.eq.f32.partialorder %v286, %v312
    %vm341 = vcmp.eq.f32.partialorder %v289, %v315
    %vm342 = vcmp.eq.f32.partialorder %v292, %v318
    %vm343 = vcmp.eq.f32.partialorder %v295, %v321
    %vm344 = vcmp.eq.f32.partialorder %v298, %v324
    %vm345 = vcmp.eq.f32.partialorder %v301, %v327
    %vm346 = vcmp.eq.f32.partialorder %v304, %v330
    %v347 = vsel %vm339, %v331, 64
    %v348 = vsel %vm340, %v332, 64
    %v349 = vsel %vm341, %v333, 64
    %v350 = vsel %vm342, %v334, 64
    %v351 = vsel %vm343, %v335, 64
    %v352 = vsel %vm344, %v336, 64
    %v353 = vsel %vm345, %v337, 64
    %v354 = vsel %vm346, %v338, 64
    %v355 = vsel %vm306, %v347, 2147483647
    %v356 = vand.u32 %v355, 65535
    %v357 = vshra.s32 %v355, 16
    %v358 = vcvt.s32.f32 %v356
    %v359 = vcvt.s32.f32 %v357
    %360 = vmin.xlane.f32.xlu0 %v359
    %v361 = vpop.xlane.xlu0 %360
    %vm362 = vcmp.eq.f32.partialorder %v359, %v361
    %v363 = vsel %vm362, %v358, inf
    %364 = vmin.xlane.f32.xlu0 %v363
    %v365 = vpop.xlane.xlu0 %364
    %v366 = vcvt.f32.s32 %v365
    %v367 = vcvt.f32.s32 %v361
    %v368 = vshll.u32 %v367, 16
    %v369 = vadd.s32 %v368, %v366
    %v370 = vsel %vm306, %v348, 2147483647
    %v371 = vand.u32 %v370, 65535
    %v372 = vshra.s32 %v370, 16
    %v373 = vcvt.s32.f32 %v371
    %v374 = vcvt.s32.f32 %v372
    %375 = vmin.xlane.f32.xlu0 %v374
    %v376 = vpop.xlane.xlu0 %375
    %vm377 = vcmp.eq.f32.partialorder %v374, %v376
    %v378 = vsel %vm377, %v373, inf
    %379 = vmin.xlane.f32.xlu0 %v378
    %v380 = vpop.xlane.xlu0 %379
    %v381 = vcvt.f32.s32 %v380
    %v382 = vcvt.f32.s32 %v376
    %v383 = vshll.u32 %v382, 16
    %v384 = vadd.s32 %v383, %v381
    %v385 = vsel %vm306, %v349, 2147483647
    %v386 = vand.u32 %v385, 65535
    %v387 = vshra.s32 %v385, 16
    %v388 = vcvt.s32.f32 %v386
    %v389 = vcvt.s32.f32 %v387
    %390 = vmin.xlane.f32.xlu0 %v389
    %v391 = vpop.xlane.xlu0 %390
    %vm392 = vcmp.eq.f32.partialorder %v389, %v391
    %v393 = vsel %vm392, %v388, inf
    %394 = vmin.xlane.f32.xlu0 %v393
    %v395 = vpop.xlane.xlu0 %394
    %v396 = vcvt.f32.s32 %v395
    %v397 = vcvt.f32.s32 %v391
    %v398 = vshll.u32 %v397, 16
    %v399 = vadd.s32 %v398, %v396
    %v400 = vsel %vm306, %v350, 2147483647
    %v401 = vand.u32 %v400, 65535
    %v402 = vshra.s32 %v400, 16
    %v403 = vcvt.s32.f32 %v401
    %v404 = vcvt.s32.f32 %v402
    %405 = vmin.xlane.f32.xlu0 %v404
    %v406 = vpop.xlane.xlu0 %405
    %vm407 = vcmp.eq.f32.partialorder %v404, %v406
    %v408 = vsel %vm407, %v403, inf
    %409 = vmin.xlane.f32.xlu0 %v408
    %v410 = vpop.xlane.xlu0 %409
    %v411 = vcvt.f32.s32 %v410
    %v412 = vcvt.f32.s32 %v406
    %v413 = vshll.u32 %v412, 16
    %v414 = vadd.s32 %v413, %v411
    %v415 = vsel %vm306, %v351, 2147483647
    %v416 = vand.u32 %v415, 65535
    %v417 = vshra.s32 %v415, 16
    %v418 = vcvt.s32.f32 %v416
    %v419 = vcvt.s32.f32 %v417
    %420 = vmin.xlane.f32.xlu0 %v419
    %v421 = vpop.xlane.xlu0 %420
    %vm422 = vcmp.eq.f32.partialorder %v419, %v421
    %v423 = vsel %vm422, %v418, inf
    %424 = vmin.xlane.f32.xlu0 %v423
    %v425 = vpop.xlane.xlu0 %424
    %v426 = vcvt.f32.s32 %v425
    %v427 = vcvt.f32.s32 %v421
    %v428 = vshll.u32 %v427, 16
    %v429 = vadd.s32 %v428, %v426
    %v430 = vsel %vm306, %v352, 2147483647
    %v431 = vand.u32 %v430, 65535
    %v432 = vshra.s32 %v430, 16
    %v433 = vcvt.s32.f32 %v431
    %v434 = vcvt.s32.f32 %v432
    %435 = vmin.xlane.f32.xlu0 %v434
    %v436 = vpop.xlane.xlu0 %435
    %vm437 = vcmp.eq.f32.partialorder %v434, %v436
    %v438 = vsel %vm437, %v433, inf
    %439 = vmin.xlane.f32.xlu0 %v438
    %v440 = vpop.xlane.xlu0 %439
    %v441 = vcvt.f32.s32 %v440
    %v442 = vcvt.f32.s32 %v436
    %v443 = vshll.u32 %v442, 16
    %v444 = vadd.s32 %v443, %v441
    %v445 = vsel %vm306, %v353, 2147483647
    %v446 = vand.u32 %v445, 65535
    %v447 = vshra.s32 %v445, 16
    %v448 = vcvt.s32.f32 %v446
    %v449 = vcvt.s32.f32 %v447
    %450 = vmin.xlane.f32.xlu0 %v449
    %v451 = vpop.xlane.xlu0 %450
    %vm452 = vcmp.eq.f32.partialorder %v449, %v451
    %v453 = vsel %vm452, %v448, inf
    %454 = vmin.xlane.f32.xlu0 %v453
    %v455 = vpop.xlane.xlu0 %454
    %v456 = vcvt.f32.s32 %v455
    %v457 = vcvt.f32.s32 %v451
    %v458 = vshll.u32 %v457, 16
    %v459 = vadd.s32 %v458, %v456
    %v460 = vsel %vm306, %v354, 2147483647
    %v461 = vand.u32 %v460, 65535
    %v462 = vshra.s32 %v460, 16
    %v463 = vcvt.s32.f32 %v461
    %v464 = vcvt.s32.f32 %v462
    %465 = vmin.xlane.f32.xlu0 %v464
    %v466 = vpop.xlane.xlu0 %465
    %vm467 = vcmp.eq.f32.partialorder %v464, %v466
    %v468 = vsel %vm467, %v463, inf
    %469 = vmin.xlane.f32.xlu0 %v468
    %v470 = vpop.xlane.xlu0 %469
    %v471 = vcvt.f32.s32 %v470
    %v472 = vcvt.f32.s32 %v466
    %v473 = vshll.u32 %v472, 16
    %v474 = vadd.s32 %v473, %v471
    %vm475 = vcmp.eq.s32.totalorder %v331, %v369
    %vm476 = vcmp.eq.s32.totalorder %v332, %v384
    %vm477 = vcmp.eq.s32.totalorder %v333, %v399
    %vm478 = vcmp.eq.s32.totalorder %v334, %v414
    %vm479 = vcmp.eq.s32.totalorder %v335, %v429
    %vm480 = vcmp.eq.s32.totalorder %v336, %v444
    %vm481 = vcmp.eq.s32.totalorder %v337, %v459
    %vm482 = vcmp.eq.s32.totalorder %v338, %v474
    %v483 = vsel %vm475, 1, 0
    %v484 = vsel %vm476, 1, 0
    %v485 = vsel %vm477, 1, 0
    %v486 = vsel %vm478, 1, 0
    %v487 = vsel %vm479, 1, 0
    %v488 = vsel %vm480, 1, 0
    %v489 = vsel %vm481, 1, 0
    %v490 = vsel %vm482, 1, 0
    %v491 = vcvt.s32.f32 %v483
    %v492 = vcvt.s32.f32 %v484
    %v493 = vcvt.s32.f32 %v485
    %v494 = vcvt.s32.f32 %v486
    %v495 = vcvt.s32.f32 %v487
    %v496 = vcvt.s32.f32 %v488
    %v497 = vcvt.s32.f32 %v489
    %v498 = vcvt.s32.f32 %v490
    %v500 = vsel %vm306, %v491, 0
    %v503 = vsel %vm306, %v492, 0
    %v506 = vsel %vm306, %v493, 0
    %v509 = vsel %vm306, %v494, 0
    %v512 = vsel %vm306, %v495, 0
    %v515 = vsel %vm306, %v496, 0
    %v518 = vsel %vm306, %v497, 0
    %v521 = vsel %vm306, %v498, 0
    %523 = vmatpush.msra.mxu0 0.0
    %524 = vmatpush.msra.mxu0 0.0
    %525 = vmatpush.msra.mxu0 0.0
    %526 = vmatpush.msra.mxu0 0.0
    %527 = vmatpush.msra.mxu0 0.0
    %528 = vmatpush.msra.mxu0 0.0
    %529 = vmatpush.msra.mxu0 0.0
    %530 = vmatpush.msra.mxu0 0.0
    %531 = vmatpush.msra.mxu0 %v128
    %532 = vmatpush.msra.mxu0 %v127
    %533 = vmatpush.msra.mxu0 %v126
    %534 = vmatpush.msra.mxu0 %v125
    %535 = vmatpush.msra.mxu0 %v124
    %536 = vmatpush.msra.mxu0 %v123
    %537 = vmatpush.msra.mxu0 %v122
    %538 = vmatpush.msra.mxu0 %v121
    %539 = vmatmul.f32.gmra.mxu0 %v500
    %v540 = vpop.f32.mrf.mxu0
    %v541 = vadd.f32 0.0, %v540
    %542 = vmatmul.f32.gmra.mxu0 %v503
    %v543 = vpop.f32.mrf.mxu0
    %v544 = vadd.f32 0.0, %v543
    %545 = vmatmul.f32.gmra.mxu0 %v506
    %v546 = vpop.f32.mrf.mxu0
    %v547 = vadd.f32 0.0, %v546
    %548 = vmatmul.f32.gmra.mxu0 %v509
    %v549 = vpop.f32.mrf.mxu0
    %v550 = vadd.f32 0.0, %v549
    %551 = vmatmul.f32.gmra.mxu0 %v512
    %v552 = vpop.f32.mrf.mxu0
    %v553 = vadd.f32 0.0, %v552
    %554 = vmatmul.f32.gmra.mxu0 %v515
    %v555 = vpop.f32.mrf.mxu0
    %v556 = vadd.f32 0.0, %v555
    %557 = vmatmul.f32.gmra.mxu0 %v518
    %v558 = vpop.f32.mrf.mxu0
    %v559 = vadd.f32 0.0, %v558
    %560 = vmatmul.f32.gmra.mxu0 %v521
    %v561 = vpop.f32.mrf.mxu0
    %v562 = vadd.f32 0.0, %v561
    %563 = vdwg.mxu0
    %v564 = vld [vmem:[#allocation7] sm:$0xff]
    %v565 = vld [vmem:[#allocation7 + $0x8] sm:$0xff]
    %v566 = vld [vmem:[#allocation7 + $0x10] sm:$0xff]
    %v567 = vld [vmem:[#allocation7 + $0x18] sm:$0xff]
    %v568 = vld [vmem:[#allocation7 + $0x20] sm:$0xff]
    %v569 = vld [vmem:[#allocation7 + $0x28] sm:$0xff]
    %v570 = vld [vmem:[#allocation7 + $0x30] sm:$0xff]
    %v571 = vld [vmem:[#allocation7 + $0x38] sm:$0xff]
    %v572 = vld [vmem:[#allocation7 + $0x40] sm:$0xff]
    %v573 = vld [vmem:[#allocation7 + $0x48] sm:$0xff]
    %v574 = vld [vmem:[#allocation7 + $0x50] sm:$0xff]
    %v575 = vld [vmem:[#allocation7 + $0x58] sm:$0xff]
    %v576 = vld [vmem:[#allocation7 + $0x60] sm:$0xff]
    %v577 = vld [vmem:[#allocation7 + $0x68] sm:$0xff]
    %v578 = vld [vmem:[#allocation7 + $0x70] sm:$0xff]
    %v579 = vld [vmem:[#allocation7 + $0x78] sm:$0xff]
    %v580 = vld [vmem:[#allocation8] sm:$0xff]
    %v581 = vld [vmem:[#allocation8 + $0x8] sm:$0xff]
    %v582 = vld [vmem:[#allocation8 + $0x10] sm:$0xff]
    %v583 = vld [vmem:[#allocation8 + $0x18] sm:$0xff]
    %v584 = vld [vmem:[#allocation8 + $0x20] sm:$0xff]
    %v585 = vld [vmem:[#allocation8 + $0x28] sm:$0xff]
    %v586 = vld [vmem:[#allocation8 + $0x30] sm:$0xff]
    %v587 = vld [vmem:[#allocation8 + $0x38] sm:$0xff]
    %v588 = vld [vmem:[#allocation8 + $0x40] sm:$0xff]
    %v589 = vld [vmem:[#allocation8 + $0x48] sm:$0xff]
    %v590 = vld [vmem:[#allocation8 + $0x50] sm:$0xff]
    %v591 = vld [vmem:[#allocation8 + $0x58] sm:$0xff]
    %v592 = vld [vmem:[#allocation8 + $0x60] sm:$0xff]
    %v593 = vld [vmem:[#allocation8 + $0x68] sm:$0xff]
    %v594 = vld [vmem:[#allocation8 + $0x70] sm:$0xff]
    %v595 = vld [vmem:[#allocation8 + $0x78] sm:$0xff]
    %596 = vmatpush.msra.mxu0 %v579
    %597 = vmatpush.msra.mxu0 %v578
    %598 = vmatpush.msra.mxu0 %v577
    %599 = vmatpush.msra.mxu0 %v576
    %600 = vmatpush.msra.mxu0 %v575
    %601 = vmatpush.msra.mxu0 %v574
    %602 = vmatpush.msra.mxu0 %v573
    %603 = vmatpush.msra.mxu0 %v572
    %604 = vmatpush.msra.mxu0 %v571
    %605 = vmatpush.msra.mxu0 %v570
    %606 = vmatpush.msra.mxu0 %v569
    %607 = vmatpush.msra.mxu0 %v568
    %608 = vmatpush.msra.mxu0 %v567
    %609 = vmatpush.msra.mxu0 %v566
    %610 = vmatpush.msra.mxu0 %v565
    %611 = vmatpush.msra.mxu0 %v564
    %612 = vmatmul.f32.gmra.mxu0 %v541
    %v613 = vpop.f32.mrf.mxu0
    %v614 = vadd.f32 0.0, %v613
    %615 = vmatmul.f32.gmra.mxu0 %v544
    %v616 = vpop.f32.mrf.mxu0
    %v617 = vadd.f32 0.0, %v616
    %618 = vmatmul.f32.gmra.mxu0 %v547
    %v619 = vpop.f32.mrf.mxu0
    %v620 = vadd.f32 0.0, %v619
    %621 = vmatmul.f32.gmra.mxu0 %v550
    %v622 = vpop.f32.mrf.mxu0
    %v623 = vadd.f32 0.0, %v622
    %624 = vmatmul.f32.gmra.mxu0 %v553
    %v625 = vpop.f32.mrf.mxu0
    %v626 = vadd.f32 0.0, %v625
    %627 = vmatmul.f32.gmra.mxu0 %v556
    %v628 = vpop.f32.mrf.mxu0
    %v629 = vadd.f32 0.0, %v628
    %630 = vmatmul.f32.gmra.mxu0 %v559
    %v631 = vpop.f32.mrf.mxu0
    %v632 = vadd.f32 0.0, %v631
    %633 = vmatmul.f32.gmra.mxu0 %v562
    %v634 = vpop.f32.mrf.mxu0
    %v635 = vadd.f32 0.0, %v634
    %636 = vdwg.mxu0
    %v637 = vmax.f32 %v614, 0.0
    %v638 = vmax.f32 %v617, 0.0
    %v639 = vmax.f32 %v620, 0.0
    %v640 = vmax.f32 %v623, 0.0
    %v641 = vmax.f32 %v626, 0.0
    %v642 = vmax.f32 %v629, 0.0
    %v643 = vmax.f32 %v632, 0.0
    %v644 = vmax.f32 %v635, 0.0
    %645 = vmatpush.msra.mxu0 %v595
    %646 = vmatpush.msra.mxu0 %v594
    %647 = vmatpush.msra.mxu0 %v593
    %648 = vmatpush.msra.mxu0 %v592
    %649 = vmatpush.msra.mxu0 %v591
    %650 = vmatpush.msra.mxu0 %v590
    %651 = vmatpush.msra.mxu0 %v589
    %652 = vmatpush.msra.mxu0 %v588
    %653 = vmatpush.msra.mxu0 %v587
    %654 = vmatpush.msra.mxu0 %v586
    %655 = vmatpush.msra.mxu0 %v585
    %656 = vmatpush.msra.mxu0 %v584
    %657 = vmatpush.msra.mxu0 %v583
    %658 = vmatpush.msra.mxu0 %v582
    %659 = vmatpush.msra.mxu0 %v581
    %660 = vmatpush.msra.mxu0 %v580
    %661 = vmatmul.f32.gmra.mxu0 %v637
    %v662 = vpop.f32.mrf.mxu0
    %v663 = vadd.f32 0.0, %v662
    %664 = vmatmul.f32.gmra.mxu0 %v638
    %v665 = vpop.f32.mrf.mxu0
    %v666 = vadd.f32 0.0, %v665
    %667 = vmatmul.f32.gmra.mxu0 %v639
    %v668 = vpop.f32.mrf.mxu0
    %v669 = vadd.f32 0.0, %v668
    %670 = vmatmul.f32.gmra.mxu0 %v640
    %v671 = vpop.f32.mrf.mxu0
    %v672 = vadd.f32 0.0, %v671
    %673 = vmatmul.f32.gmra.mxu0 %v641
    %v674 = vpop.f32.mrf.mxu0
    %v675 = vadd.f32 0.0, %v674
    %676 = vmatmul.f32.gmra.mxu0 %v642
    %v677 = vpop.f32.mrf.mxu0
    %v678 = vadd.f32 0.0, %v677
    %679 = vmatmul.f32.gmra.mxu0 %v643
    %v680 = vpop.f32.mrf.mxu0
    %v681 = vadd.f32 0.0, %v680
    %682 = vmatmul.f32.gmra.mxu0 %v644
    %v683 = vpop.f32.mrf.mxu0
    %v684 = vadd.f32 0.0, %v683
    %685 = vdwg.mxu0
    %v686 = vmax.f32 %v663, 0.0
    %v687 = vmax.f32 %v666, 0.0
    %v688 = vmax.f32 %v669, 0.0
    %v689 = vmax.f32 %v672, 0.0
    %v690 = vmax.f32 %v675, 0.0
    %v691 = vmax.f32 %v678, 0.0
    %v692 = vmax.f32 %v681, 0.0
    %v693 = vmax.f32 %v684, 0.0
    %v694 = vadd.f32 %v541, %v686
    %v695 = vadd.f32 %v544, %v687
    %v696 = vadd.f32 %v547, %v688
    %v697 = vadd.f32 %v550, %v689
    %v698 = vadd.f32 %v553, %v690
    %v699 = vadd.f32 %v556, %v691
    %v700 = vadd.f32 %v559, %v692
    %v701 = vadd.f32 %v562, %v693
    %702 = vst [vmem:[#allocation13] sm:$0xff] %v694
    %703 = vst [vmem:[#allocation13 + $0x8] sm:$0xff] %v695
    %704 = vst [vmem:[#allocation13 + $0x10] sm:$0xff] %v696
    %705 = vst [vmem:[#allocation13 + $0x18] sm:$0xff] %v697
    %706 = vst [vmem:[#allocation13 + $0x20] sm:$0xff] %v698
    %707 = vst [vmem:[#allocation13 + $0x28] sm:$0xff] %v699
    %708 = vst [vmem:[#allocation13 + $0x30] sm:$0xff] %v700
    %709 = vst [vmem:[#allocation13 + $0x38] sm:$0xff] %v701
    %710 = vmatpush.msra.mxu0 %v579
    %711 = vmatpush.msra.mxu0 %v578
    %712 = vmatpush.msra.mxu0 %v577
    %713 = vmatpush.msra.mxu0 %v576
    %714 = vmatpush.msra.mxu0 %v575
    %715 = vmatpush.msra.mxu0 %v574
    %716 = vmatpush.msra.mxu0 %v573
    %717 = vmatpush.msra.mxu0 %v572
    %718 = vmatpush.msra.mxu0 %v571
    %719 = vmatpush.msra.mxu0 %v570
    %720 = vmatpush.msra.mxu0 %v569
    %721 = vmatpush.msra.mxu0 %v568
    %722 = vmatpush.msra.mxu0 %v567
    %723 = vmatpush.msra.mxu0 %v566
    %724 = vmatpush.msra.mxu0 %v565
    %725 = vmatpush.msra.mxu0 %v564
    %726 = vmatmul.f32.gmra.mxu0 %v129
    %v727 = vpop.f32.mrf.mxu0
    %v728 = vadd.f32 0.0, %v727
    %729 = vmatmul.f32.gmra.mxu0 %v130
    %v730 = vpop.f32.mrf.mxu0
    %v731 = vadd.f32 0.0, %v730
    %732 = vmatmul.f32.gmra.mxu0 %v131
    %v733 = vpop.f32.mrf.mxu0
    %v734 = vadd.f32 0.0, %v733
    %735 = vmatmul.f32.gmra.mxu0 %v132
    %v736 = vpop.f32.mrf.mxu0
    %v737 = vadd.f32 0.0, %v736
    %738 = vmatmul.f32.gmra.mxu0 %v133
    %v739 = vpop.f32.mrf.mxu0
    %v740 = vadd.f32 0.0, %v739
    %741 = vmatmul.f32.gmra.mxu0 %v134
    %v742 = vpop.f32.mrf.mxu0
    %v743 = vadd.f32 0.0, %v742
    %744 = vmatmul.f32.gmra.mxu0 %v135
    %v745 = vpop.f32.mrf.mxu0
    %v746 = vadd.f32 0.0, %v745
    %747 = vmatmul.f32.gmra.mxu0 %v136
    %v748 = vpop.f32.mrf.mxu0
    %v749 = vadd.f32 0.0, %v748
    %750 = vdwg.mxu0
    %v751 = vmax.f32 %v728, 0.0
    %v752 = vmax.f32 %v731, 0.0
    %v753 = vmax.f32 %v734, 0.0
    %v754 = vmax.f32 %v737, 0.0
    %v755 = vmax.f32 %v740, 0.0
    %v756 = vmax.f32 %v743, 0.0
    %v757 = vmax.f32 %v746, 0.0
    %v758 = vmax.f32 %v749, 0.0
    %759 = vmatpush.msra.mxu0 %v595
    %760 = vmatpush.msra.mxu0 %v594
    %761 = vmatpush.msra.mxu0 %v593
    %762 = vmatpush.msra.mxu0 %v592
    %763 = vmatpush.msra.mxu0 %v591
    %764 = vmatpush.msra.mxu0 %v590
    %765 = vmatpush.msra.mxu0 %v589
    %766 = vmatpush.msra.mxu0 %v588
    %767 = vmatpush.msra.mxu0 %v587
    %768 = vmatpush.msra.mxu0 %v586
    %769 = vmatpush.msra.mxu0 %v585
    %770 = vmatpush.msra.mxu0 %v584
    %771 = vmatpush.msra.mxu0 %v583
    %772 = vmatpush.msra.mxu0 %v582
    %773 = vmatpush.msra.mxu0 %v581
    %774 = vmatpush.msra.mxu0 %v580
    %775 = vmatmul.f32.gmra.mxu0 %v751
    %v776 = vpop.f32.mrf.mxu0
    %v777 = vadd.f32 0.0, %v776
    %778 = vmatmul.f32.gmra.mxu0 %v752
    %v779 = vpop.f32.mrf.mxu0
    %v780 = vadd.f32 0.0, %v779
    %781 = vmatmul.f32.gmra.mxu0 %v753
    %v782 = vpop.f32.mrf.mxu0
    %v783 = vadd.f32 0.0, %v782
    %784 = vmatmul.f32.gmra.mxu0 %v754
    %v785 = vpop.f32.mrf.mxu0
    %v786 = vadd.f32 0.0, %v785
    %787 = vmatmul.f32.gmra.mxu0 %v755
    %v788 = vpop.f32.mrf.mxu0
    %v789 = vadd.f32 0.0, %v788
    %790 = vmatmul.f32.gmra.mxu0 %v756
    %v791 = vpop.f32.mrf.mxu0
    %v792 = vadd.f32 0.0, %v791
    %793 = vmatmul.f32.gmra.mxu0 %v757
    %v794 = vpop.f32.mrf.mxu0
    %v795 = vadd.f32 0.0, %v794
    %796 = vmatmul.f32.gmra.mxu0 %v758
    %v797 = vpop.f32.mrf.mxu0
    %v798 = vadd.f32 0.0, %v797
    %799 = vdwg.mxu0
    %v800 = vmax.f32 %v777, 0.0
    %v801 = vmax.f32 %v780, 0.0
    %v802 = vmax.f32 %v783, 0.0
    %v803 = vmax.f32 %v786, 0.0
    %v804 = vmax.f32 %v789, 0.0
    %v805 = vmax.f32 %v792, 0.0
    %v806 = vmax.f32 %v795, 0.0
    %v807 = vmax.f32 %v798, 0.0
    %v808 = vadd.f32 %v129, %v800
    %v809 = vadd.f32 %v130, %v801
    %v810 = vadd.f32 %v131, %v802
    %v811 = vadd.f32 %v132, %v803
    %v812 = vadd.f32 %v133, %v804
    %v813 = vadd.f32 %v134, %v805
    %v814 = vadd.f32 %v135, %v806
    %v815 = vadd.f32 %v136, %v807
    %816 = vst [vmem:[#allocation14] sm:$0xff] %v808
    %817 = vst [vmem:[#allocation14 + $0x8] sm:$0xff] %v809
    %818 = vst [vmem:[#allocation14 + $0x10] sm:$0xff] %v810
    %819 = vst [vmem:[#allocation14 + $0x18] sm:$0xff] %v811
    %820 = vst [vmem:[#allocation14 + $0x20] sm:$0xff] %v812
    %821 = vst [vmem:[#allocation14 + $0x28] sm:$0xff] %v813
    %822 = vst [vmem:[#allocation14 + $0x30] sm:$0xff] %v814
    %823 = vst [vmem:[#allocation14 + $0x38] sm:$0xff] %v815
    // Predicated region
    $region50: #{tpu_custom_call.1} parent=1 // pred_check
      _
    $region51: #{tpu_custom_call.1} parent=1 // pred_check_branch
      %825 = sbr.rel (0) target = $region53
    $region52: #{tpu_custom_call.1} parent=1 // pred_region
      %827 = vsyncadd [#allocation4], 0
      %s828 = sshll.u32 [#allocation13], 4
      %s829 = int_to_ptr.vmem [resolvable:$true] %s828
      %s830 = sshll.u32 %s6, 4
      %s831 = int_to_ptr.hbm [resolvable:$true] %s830
      %836 = dma.vmem_to_hbm [thread:$0]  %s829, 1024, %s831, [#allocation4], 128, 128, 8
    $region53: #{tpu_custom_call.1} parent=1 // pred_fallthru
      _
    // Predicated region
    $region54: #{tpu_custom_call.1} parent=1 // pred_check
      _
    $region55: #{tpu_custom_call.1} parent=1 // pred_check_branch
      %838 = sbr.rel (0) target = $region57
    $region56: #{tpu_custom_call.1} parent=1 // pred_region
      %840 = vsyncadd [#allocation15], 0
      %s841 = sshll.u32 [#allocation14], 4
      %s842 = int_to_ptr.vmem [resolvable:$true] %s841
      %s843 = sshll.u32 %s7, 4
      %s844 = int_to_ptr.hbm [resolvable:$true] %s843
      %849 = dma.vmem_to_hbm [thread:$0]  %s842, 1024, %s844, [#allocation15], 128, 128, 8
    $region57: #{tpu_custom_call.1} parent=1 // pred_fallthru
      _
    // Predicated region
    $region58: #{tpu_custom_call.1} parent=1 // pred_check
      _
    $region59: #{tpu_custom_call.1} parent=1 // pred_check_branch
      %851 = sbr.rel (0) target = $region61
    $region60: #{tpu_custom_call.1} parent=1 // pred_region
      %853 = dma.done [#allocation4], 1024
    $region61: #{tpu_custom_call.1} parent=1 // pred_fallthru
      _
    // Predicated region
    $region62: #{tpu_custom_call.1} parent=1 // pred_check
      _
    $region63: #{tpu_custom_call.1} parent=1 // pred_check_branch
      %855 = sbr.rel (0) target = $region65
    $region64: #{tpu_custom_call.1} parent=1 // pred_region
      %857 = dma.done [#allocation15], 1024
    $region65: #{tpu_custom_call.1} parent=1 // pred_fallthru
      _
    %858 = vsyncpa [#allocation3], 1
    %859 = vsyncpa [#allocation6], 1
    %860 = vsyncpa [#allocation9], 1
    %861 = vsyncpa [#allocation12], 1
    %862 = vsyncpa [#allocation4], 1
    %863 = vsyncpa [#allocation15], 1

</llo_original>
